<compile_context>
chip_gen: v7x
topology: tpu7x:2x2x1
jax: 0.10.0
libtpu: 0.0.40
codegen_flags: <defaults>
</compile_context>

<pallas_src>
import math

import jax
import jax.numpy as jnp
import numpy as np
from jax.experimental import pallas as pl
from jax.experimental.pallas import tpu as pltpu


# ---------------------------------------------------------------------------
# Helpers
# ---------------------------------------------------------------------------
def _pick_tile(n, preferred):
    """Largest tile <= preferred that divides n (multiple of 8 when tiling)."""
    if n <= preferred:
        return n
    for t in range(preferred, 0, -1):
        if n % t == 0 and t % 8 == 0:
            return t
    return n


# ---------------------------------------------------------------------------
# Kernel 1: fused Q/K/V projection   y = x @ W^T + b
#   grid = (3, M_tiles): axis 0 selects the projection (q/k/v), axis 1 tiles rows.
#   bf16 MXU inputs, f32 accumulation, bf16 output (consumed by the attn kernel).
# ---------------------------------------------------------------------------
def _proj_kernel(x_ref, w_ref, b_ref, o_ref):
    y = jnp.dot(x_ref[...], w_ref[...], preferred_element_type=jnp.float32)
    y = y + b_ref[...].astype(jnp.float32)
    o_ref[...] = y.astype(o_ref.dtype)


def _qkv_project(q, k, v, ws_t, bs, *, tile_m):
    """q,k,v: (bsz, seq, d) f32; ws_t: (3, d, d) bf16; bs: (3, 1, d) bf16."""
    bsz, seq, d = q.shape
    m = bsz * seq
    xs = jnp.stack([q.reshape(m, d), k.reshape(m, d), v.reshape(m, d)])
    xs = xs.astype(jnp.bfloat16)

    out = pl.pallas_call(
        _proj_kernel,
        out_shape=jax.ShapeDtypeStruct((3, m, d), jnp.bfloat16),
        grid_spec=pltpu.PrefetchScalarGridSpec(
            num_scalar_prefetch=0,
            grid=(3, m // tile_m),
            in_specs=[
                pl.BlockSpec((None, tile_m, d), lambda p, i: (p, i, 0)),
                pl.BlockSpec((None, d, d), lambda p, i: (p, 0, 0)),
                pl.BlockSpec((None, 1, d), lambda p, i: (p, 0, 0)),
            ],
            out_specs=pl.BlockSpec((None, tile_m, d), lambda p, i: (p, i, 0)),
        ),
        compiler_params=pltpu.CompilerParams(
            dimension_semantics=("parallel", "parallel"),
            vmem_limit_bytes=48 * 1024 * 1024,
        ),
    )(xs, ws_t, bs)
    return out[0], out[1], out[2]


# ---------------------------------------------------------------------------
# Kernel 2: flash-attention forward with online softmax.
#   grid = (bsz, q_tiles, kv_tiles); kv is the reduction axis (last, "arbitrary").
#   q/k/v refs: (nhead, Tq|Tk, dk) bf16; bias ref: (Tq, Tk) bf16 additive mask.
#   Scratch: m/l (nhead, Tq, 1) f32, acc (nhead, Tq, dk) f32 — persist across kv.
# ---------------------------------------------------------------------------
def _flash_mha_kernel(q_ref, k_ref, v_ref, bias_ref, o_ref, m_sc, l_sc, acc_sc):
    ki = pl.program_id(2)

    @pl.when(ki == 0)
    def _():
        m_sc[...] = jnp.full_like(m_sc, -jnp.inf)
        l_sc[...] = jnp.zeros_like(l_sc)
        acc_sc[...] = jnp.zeros_like(acc_sc)

    q = q_ref[...]                                   # (nhead, Tq, dk) bf16 (pre-scaled)
    k = k_ref[...]                                   # (nhead, Tk, dk) bf16
    bias = bias_ref[...].astype(jnp.float32)         # (Tq, Tk), -1e30 where masked

    # Batched NT contraction over dk (no K transpose materialized).
    s = jnp.einsum("hqd,hkd->hqk", q, k,
                   preferred_element_type=jnp.float32)        # (nhead, Tq, Tk) f32
    s = s + bias[None, :, :]

    m_prev = m_sc[...]
    m_new = jnp.maximum(m_prev, jnp.max(s, axis=-1, keepdims=True))
    alpha = jnp.exp(m_prev - m_new)                  # f32 softmax statistics
    p = jnp.exp(s - m_new)
    l_sc[...] = alpha * l_sc[...] + jnp.sum(p, axis=-1, keepdims=True)
    acc_sc[...] = alpha * acc_sc[...] + jnp.einsum(
        "hqk,hkd->hqd", p.astype(v_ref.dtype), v_ref[...],
        preferred_element_type=jnp.float32)
    m_sc[...] = m_new

    @pl.when(ki == pl.num_programs(2) - 1)
    def _():
        inv_l = pl.reciprocal(l_sc[...], approx=True)          # EUP, (nhead, Tq, 1)
        o_ref[...] = (acc_sc[...] * inv_l).astype(o_ref.dtype)


def _flash_attention(qh, kh, vh, bias, *, tq, tk):
    bsz, nhead, seq, dk = qh.shape
    return pl.pallas_call(
        _flash_mha_kernel,
        out_shape=jax.ShapeDtypeStruct((bsz, nhead, seq, dk), jnp.float32),
        grid_spec=pltpu.PrefetchScalarGridSpec(
            num_scalar_prefetch=0,
            grid=(bsz, seq // tq, seq // tk),
            in_specs=[
                pl.BlockSpec((None, nhead, tq, dk), lambda b, qi, ki: (b, 0, qi, 0)),
                pl.BlockSpec((None, nhead, tk, dk), lambda b, qi, ki: (b, 0, ki, 0)),
                pl.BlockSpec((None, nhead, tk, dk), lambda b, qi, ki: (b, 0, ki, 0)),
                pl.BlockSpec((None, tq, tk), lambda b, qi, ki: (b, qi, ki)),
            ],
            out_specs=pl.BlockSpec((None, nhead, tq, dk),
                                   lambda b, qi, ki: (b, 0, qi, 0)),
            scratch_shapes=[
                pltpu.VMEM((nhead, tq, 1), jnp.float32),   # running max m
                pltpu.VMEM((nhead, tq, 1), jnp.float32),   # running denom l
                pltpu.VMEM((nhead, tq, dk), jnp.float32),  # un-normalized output acc
            ],
        ),
        compiler_params=pltpu.CompilerParams(
            dimension_semantics=("parallel", "parallel", "arbitrary"),
            vmem_limit_bytes=48 * 1024 * 1024,   # fits v7x's 64 MiB VMEM budget
        ),
    )(qh, kh, vh, bias)


# ---------------------------------------------------------------------------
# Wrapper matching MultiHeadAttention.forward(q, v, k, attn_mask)
# ---------------------------------------------------------------------------
def multi_head_attention(q, v, k, attn_mask, params, *, nhead):
    """q, v, k: (bsz, seq, d_model) f32; attn_mask: (bsz, seq, seq) bool (True = masked)."""
    bsz, seq, d_model = q.shape
    dk = d_model // nhead
    inv_sqrt_dk = 1.0 / math.sqrt(dk)

    # torch nn.Linear: y = x @ W.T + b.  Fold the 1/sqrt(dk) softmax scale into Wq/bq.
    wq_t = (params["wq"].T * inv_sqrt_dk).astype(jnp.bfloat16)
    wk_t = params["wk"].T.astype(jnp.bfloat16)
    wv_t = params["wv"].T.astype(jnp.bfloat16)
    bq = (params["bq"] * inv_sqrt_dk).astype(jnp.bfloat16)
    bk = params["bk"].astype(jnp.bfloat16)
    bv = params["bv"].astype(jnp.bfloat16)
    ws = jnp.stack([wq_t, wk_t, wv_t])                       # (3, d, d)
    bs = jnp.stack([bq, bk, bv]).reshape(3, 1, d_model)      # (3, 1, d)

    tile_m = _pick_tile(bsz * seq, 256)
    qp, kp, vp = _qkv_project(q, k, v, ws, bs, tile_m=tile_m)

    def split_heads(x):  # (bsz*seq, d_model) -> (bsz, nhead, seq, dk)
        return x.reshape(bsz, seq, nhead, dk).transpose(0, 2, 1, 3)

    qh, kh, vh = split_heads(qp), split_heads(kp), split_heads(vp)

    # Additive mask bias in bf16; large finite negative avoids NaN for fully
    # masked rows (unlike the -inf masked_fill in the torch module).
    bias = jnp.where(attn_mask, jnp.float32(-1e30), jnp.float32(0.0)).astype(jnp.bfloat16)

    tq = _pick_tile(seq, 512)
    tk = _pick_tile(seq, 512)
    out_bhsd = _flash_attention(qh, kh, vh, bias, tq=tq, tk=tk)

    # (b, h, s, dk) -> (b, s, h*dk): matches torch's 'iqhd' einsum + reshape.
    return out_bhsd.transpose(0, 2, 1, 3).reshape(bsz, seq, d_model)


# ---------------------------------------------------------------------------
# Pure-JAX f32 mirror of the PyTorch forward, for verification.
# ---------------------------------------------------------------------------
def reference_mha(q, v, k, attn_mask, params, *, nhead):
    bsz, seq, d_model = q.shape
    dk = d_model // nhead

    def lin(x, w, b):
        return x @ w.T + b

    def flat(x):
        return x.reshape(bsz, seq, nhead, dk).transpose(0, 2, 1, 3)  # (b, h, s, dk)

    qp = flat(lin(q, params["wq"], params["bq"]))
    kp = flat(lin(k, params["wk"], params["bk"]))
    vp = flat(lin(v, params["wv"], params["bv"]))

    logits = jnp.einsum("bhqd,bhkd->bhqk", qp, kp) / np.sqrt(dk)
    logits = logits + jnp.where(attn_mask, -jnp.inf, 0.0)[:, None, :, :]
    attn = jax.nn.softmax(logits, axis=-1)
    out = jnp.einsum("bhkd,bhqk->bqhd", vp, attn).reshape(bsz, seq, d_model)
    return out


if __name__ == "__main__":
    bsz, seq, d_model, nhead = 2, 8, 32, 4

    key = jax.random.PRNGKey(0)
    ks = jax.random.split(key, 10)

    q = jax.random.normal(ks[0], (bsz, seq, d_model), dtype=jnp.float32)
    k = jax.random.normal(ks[1], (bsz, seq, d_model), dtype=jnp.float32)
    v = jax.random.normal(ks[2], (bsz, seq, d_model), dtype=jnp.float32)

    # Deterministic parameters (torch nn.Linear shapes: W (out, in), b (out,)).
    params = {
        "wq": 0.1 * jax.random.normal(ks[3], (d_model, d_model), dtype=jnp.float32),
        "bq": 0.1 * jax.random.normal(ks[4], (d_model,), dtype=jnp.float32),
        "wk": 0.1 * jax.random.normal(ks[5], (d_model, d_model), dtype=jnp.float32),
        "bk": 0.1 * jax.random.normal(ks[6], (d_model,), dtype=jnp.float32),
        "wv": 0.1 * jax.random.normal(ks[7], (d_model, d_model), dtype=jnp.float32),
        "bv": 0.1 * jax.random.normal(ks[8], (d_model,), dtype=jnp.float32),
    }

    # Causal-style mask (True = masked); every row keeps >= 1 unmasked entry.
    row = jnp.arange(seq)[:, None]
    col = jnp.arange(seq)[None, :]
    attn_mask = jnp.broadcast_to(col > row, (bsz, seq, seq))

    out = multi_head_attention(q, v, k, attn_mask, params, nhead=nhead)
    out = jax.block_until_ready(out)

    ref = reference_mha(q, v, k, attn_mask, params, nhead=nhead)
    # bf16 MXU inputs with f32 accumulation => bf16-level tolerance vs f32 reference.
    np.testing.assert_allclose(np.asarray(out), np.asarray(ref), rtol=2e-2, atol=2e-2)

    print("KERNEL_OK")
</pallas_src>

<mosaic_0001>
module attributes {stable_mosaic.version = 11 : i64} {
  func.func @_proj_kernel(%arg0: i32, %arg1: i32, %arg2: memref<1x16x32xbf16, #tpu.memory_space<vmem>>, %arg3: memref<1x32x32xbf16, #tpu.memory_space<vmem>>, %arg4: memref<1x1x32xbf16, #tpu.memory_space<vmem>>, %arg5: memref<1x16x32xbf16, #tpu.memory_space<vmem>>) attributes {dimension_semantics = [#tpu.dimension_semantics<parallel>, #tpu.dimension_semantics<parallel>], iteration_bounds = array<i64: 3, 1>, scalar_prefetch = 0 : i64, scratch_operands = 0 : i64, tpu.core_type = #tpu.core_type<tc>, window_params = [{transform_indices = @transform_0, window_bounds = array<i64: 1, 16, 32>}, {transform_indices = @transform_1, window_bounds = array<i64: 1, 32, 32>}, {transform_indices = @transform_2, window_bounds = array<i64: 1, 1, 32>}, {transform_indices = @transform_3, window_bounds = array<i64: 1, 16, 32>}]} {
    %c0 = arith.constant 0 : index
    %c0_0 = arith.constant 0 : index
    %c0_1 = arith.constant 0 : index
    %0 = vector.load %arg2[%c0, %c0_0, %c0_1] : memref<1x16x32xbf16, #tpu.memory_space<vmem>>, vector<1x16x32xbf16>
    %1 = vector.shape_cast %0 : vector<1x16x32xbf16> to vector<16x32xbf16>
    %c0_2 = arith.constant 0 : index
    %c0_3 = arith.constant 0 : index
    %c0_4 = arith.constant 0 : index
    %2 = vector.load %arg3[%c0_2, %c0_3, %c0_4] : memref<1x32x32xbf16, #tpu.memory_space<vmem>>, vector<1x32x32xbf16>
    %3 = vector.shape_cast %2 : vector<1x32x32xbf16> to vector<32x32xbf16>
    %cst = arith.constant dense<0.000000e+00> : vector<16x32xf32>
    %4 = tpu.matmul %1, %3, %cst {dimension_numbers = #tpu.dot_dimension_numbers<[1], [0], [0], [1], [0, 0, 1, 1], [], []>} : vector<16x32xbf16>, vector<32x32xbf16>, vector<16x32xf32> -> vector<16x32xf32>
    %c0_5 = arith.constant 0 : index
    %c0_6 = arith.constant 0 : index
    %c0_7 = arith.constant 0 : index
    %5 = vector.load %arg4[%c0_5, %c0_6, %c0_7] : memref<1x1x32xbf16, #tpu.memory_space<vmem>>, vector<1x1x32xbf16>
    %6 = vector.shape_cast %5 : vector<1x1x32xbf16> to vector<1x32xbf16>
    %7 = arith.extf %6 : vector<1x32xbf16> to vector<1x32xf32>
    %8 = vector.broadcast %7 : vector<1x32xf32> to vector<16x32xf32>
    %9 = arith.addf %4, %8 : vector<16x32xf32>
    %10 = arith.truncf %9 : vector<16x32xf32> to vector<16x32xbf16>
    %c0_8 = arith.constant 0 : index
    %c0_9 = arith.constant 0 : index
    %c0_10 = arith.constant 0 : index
    %11 = vector.load %arg5[%c0_8, %c0_9, %c0_10] : memref<1x16x32xbf16, #tpu.memory_space<vmem>>, vector<1x16x32xbf16>
    %12 = vector.shape_cast %11 : vector<1x16x32xbf16> to vector<16x32xbf16>
    %13 = vector.shape_cast %10 : vector<16x32xbf16> to vector<1x16x32xbf16>
    tpu.vector_store %arg5[%c0_8, %c0_9, %c0_10], %13 {strides = array<i32>} : memref<1x16x32xbf16, #tpu.memory_space<vmem>>, vector<1x16x32xbf16>,
    return
  }
  func.func @transform_0(%arg0: i32, %arg1: i32) -> (i32, i32, i32) {
    %c0_i32 = arith.constant 0 : i32
    %c0_i32_0 = arith.constant 0 : i32
    return %arg0, %arg1, %c0_i32 : i32, i32, i32
  }
  func.func @transform_1(%arg0: i32, %arg1: i32) -> (i32, i32, i32) {
    %c0_i32 = arith.constant 0 : i32
    %c0_i32_0 = arith.constant 0 : i32
    %c0_i32_1 = arith.constant 0 : i32
    return %arg0, %c0_i32, %c0_i32_0 : i32, i32, i32
  }
  func.func @transform_2(%arg0: i32, %arg1: i32) -> (i32, i32, i32) {
    %c0_i32 = arith.constant 0 : i32
    %c0_i32_0 = arith.constant 0 : i32
    %c0_i32_1 = arith.constant 0 : i32
    return %arg0, %c0_i32, %c0_i32_0 : i32, i32, i32
  }
  func.func @transform_3(%arg0: i32, %arg1: i32) -> (i32, i32, i32) {
    %c0_i32 = arith.constant 0 : i32
    %c0_i32_0 = arith.constant 0 : i32
    return %arg0, %arg1, %c0_i32 : i32, i32, i32
  }
}

</mosaic_0001>

<llo_original>
// kernel: tpu_custom_call.1
$region0: #{tpu_custom_call.1}
  #allocation0 [shape = 'u32[]', space=smem, size = 0x4, offset = 0x4, fixed_abs, tag = 'smem constant byte address 0x4 - core index']
  #allocation1 [shape = 'u32[144,128]{1,0:T(1,128)}', space=vmem, size = 0x12000, scoped, tag = 'internal scratch']
  %s0 = inlined_call_operand.hbm [shape: bf16[3,16,32], index: 0, kind: input, shape index: {}]
  %s1 = inlined_call_operand.hbm [shape: bf16[3,32,32], index: 1, kind: input, shape index: {}]
  %s2 = inlined_call_operand.vmem [shape: bf16[3,1,32], index: 2, kind: input, shape index: {}]
  %s3 = inlined_call_operand.hbm [shape: bf16[3,16,32], index: 3, kind: output, shape index: {}]
  %s4 = sld [smem:[#allocation0]]
  $region53: #{tpu_custom_call.1} parent=0
    _
  %s6 = ssub.s32 1, %s4
  %s7 = scalar_select 0, %s6, %s4
  $region1: #{tpu_custom_call.1} parent=0
    #allocation2 [shape = 'u8[8192]{0}', space=vmem, size = 0x2000, scoped, tag = 'input window, operand 0']
    #allocation3 [shape = 's32[2]{0}', space=sflag, size = 0x8, scoped, tag = 'scoped memory for tpu_custom_call.1']
    #allocation4 [shape = 's32[2]{0}', space=sflag, size = 0x8, scoped, tag = 'scoped memory for tpu_custom_call.1']
    #allocation5 [shape = 'u8[16384]{0}', space=vmem, size = 0x4000, scoped, tag = 'input window, operand 1']
    #allocation6 [shape = 's32[2]{0}', space=sflag, size = 0x8, scoped, tag = 'scoped memory for tpu_custom_call.1']
    #allocation7 [shape = 'u8[8192]{0}', space=vmem, size = 0x2000, scoped, tag = 'output window, operand 0']
    %8 = vsyncpa [#allocation3], 0
    %s9 = scalar_lea.sflag [#allocation3], 1
    %10 = vsyncpa %s9, 0
    %11 = vsyncpa [#allocation6], 0
    %s12 = scalar_lea.sflag [#allocation6], 1
    %13 = vsyncpa %s12, 0
    %14 = vsyncpa [#allocation4], 0
    %s15 = scalar_lea.sflag [#allocation4], 1
    %16 = vsyncpa %s15, 0
    loop: start=0, step=1, limit=5
    $region2: #{tpu_custom_call.1} parent=1 // loop_pre_header
      _
    $region3: #{tpu_custom_call.1} parent=1 // loop_header
      %s18 = sphi 0, %s22
      %p19 = scmp.ge.s32.totalorder %s18, 5
      %s25 = sphi 0, %s37
      %s26 = sphi 0, %s33
      %s27 = sphi 0, %s25
      %s28 = sphi 0, %s26
      %s29 = sphi 0, %s27
      %s30 = sphi 0, %s28
      %s42 = sphi 0, %s44
      %s45 = sphi 0, %s42
      %s46 = sphi 0, %s45
      %s62 = sphi 0, %s46
      %s68 = sphi 0, %s70
      %s71 = sphi 0, %s68
      %s72 = sphi 0, %s71
      %s88 = sphi 0, %s72
      %s94 = sphi 0, %s96
      %s97 = sphi 0, %s94
      %s98 = sphi 0, %s97
      %s114 = sphi 0, %s98
      %s122 = sphi 0, %s124
      %s125 = sphi 0, %s122
      %s126 = sphi 0, %s125
      %s142 = sphi 0, %s126
    $region4: #{tpu_custom_call.1} parent=1 // loop_header_branch
      %21 = sbr.rel (%p19) target = $region8
    $region5: #{tpu_custom_call.1} parent=1 // loop_body
      %s23 = ssub.s32 %s18, 1
      %s24 = ssub.s32 %s18, 2
      %s31 = sadd.s32 1, %s26
      %p32 = scmp.ge.s32.totalorder %s31, 1
      %s33 = scalar_select %p32, 0, %s31
      %s34 = sadd.s32 1, %s25
      %s35 = scalar_select %p32, %s34, %s25
      %p36 = scmp.ge.s32.totalorder %s35, 3
      %s37 = scalar_select %p36, 0, %s35
      %s38 = ssub.s32 %s25, %s37
      %s39 = ssub.s32 %s26, %s33
      %s40 = sor.u32 %s38, %s39
      %p41 = scmp.eq.s32.totalorder %s40, 0
      %s43 = sadd.s32 %s42, 1
      %s44 = scalar_select %p41, %s42, %s43
      %p47 = pneg %p41
      %p48 = scmp.eq.s32.totalorder %s18, 2
      %p49 = por %p47, %p48
      %p50 = scmp.ne.s32.totalorder %s42, %s45
      %p51 = scmp.eq.s32.totalorder %s18, 0
      %p52 = por %p50, %p51
      %p53 = scmp.ne.s32.totalorder %s42, %s45
      %p54 = scmp.eq.s32.totalorder %s23, 2
      %p55 = por %p53, %p54
      %p56 = scmp.ne.s32.totalorder %s45, %s46
      %p57 = scmp.eq.s32.totalorder %s23, 0
      %p58 = por %p56, %p57
      %p59 = scmp.ne.s32.totalorder %s45, %s46
      %p60 = scmp.eq.s32.totalorder %s24, 2
      %p61 = por %p59, %p60
      %p63 = scmp.ne.s32.totalorder %s46, %s62
      %p64 = scmp.eq.s32.totalorder %s24, 0
      %p65 = por %p63, %p64
      %s66 = ssub.s32 %s25, %s37
      %p67 = scmp.eq.s32.totalorder %s66, 0
      %s69 = sadd.s32 %s68, 1
      %s70 = scalar_select %p67, %s68, %s69
      %p73 = pneg %p67
      %p74 = scmp.eq.s32.totalorder %s18, 2
      %p75 = por %p73, %p74
      %p76 = scmp.ne.s32.totalorder %s68, %s71
      %p77 = scmp.eq.s32.totalorder %s18, 0
      %p78 = por %p76, %p77
      %p79 = scmp.ne.s32.totalorder %s68, %s71
      %p80 = scmp.eq.s32.totalorder %s23, 2
      %p81 = por %p79, %p80
      %p82 = scmp.ne.s32.totalorder %s71, %s72
      %p83 = scmp.eq.s32.totalorder %s23, 0
      %p84 = por %p82, %p83
      %p85 = scmp.ne.s32.totalorder %s71, %s72
      %p86 = scmp.eq.s32.totalorder %s24, 2
      %p87 = por %p85, %p86
      %p89 = scmp.ne.s32.totalorder %s72, %s88
      %p90 = scmp.eq.s32.totalorder %s24, 0
      %p91 = por %p89, %p90
      %s92 = ssub.s32 %s25, %s37
      %p93 = scmp.eq.s32.totalorder %s92, 0
      %s95 = sadd.s32 %s94, 1
      %s96 = scalar_select %p93, %s94, %s95
      %p99 = pneg %p93
      %p100 = scmp.eq.s32.totalorder %s18, 2
      %p101 = por %p99, %p100
      %p102 = scmp.ne.s32.totalorder %s94, %s97
      %p103 = scmp.eq.s32.totalorder %s18, 0
      %p104 = por %p102, %p103
      %p105 = scmp.ne.s32.totalorder %s94, %s97
      %p106 = scmp.eq.s32.totalorder %s23, 2
      %p107 = por %p105, %p106
      %p108 = scmp.ne.s32.totalorder %s97, %s98
      %p109 = scmp.eq.s32.totalorder %s23, 0
      %p110 = por %p108, %p109
      %p111 = scmp.ne.s32.totalorder %s97, %s98
      %p112 = scmp.eq.s32.totalorder %s24, 2
      %p113 = por %p111, %p112
      %p115 = scmp.ne.s32.totalorder %s98, %s114
      %p116 = scmp.eq.s32.totalorder %s24, 0
      %p117 = por %p115, %p116
      %s118 = ssub.s32 %s25, %s37
      %s119 = ssub.s32 %s26, %s33
      %s120 = sor.u32 %s118, %s119
      %p121 = scmp.eq.s32.totalorder %s120, 0
      %s123 = sadd.s32 %s122, 1
      %s124 = scalar_select %p121, %s122, %s123
      %p127 = pneg %p121
      %p128 = scmp.eq.s32.totalorder %s18, 2
      %p129 = por %p127, %p128
      %p130 = scmp.ne.s32.totalorder %s122, %s125
      %p131 = scmp.eq.s32.totalorder %s18, 0
      %p132 = por %p130, %p131
      %p133 = scmp.ne.s32.totalorder %s122, %s125
      %p134 = scmp.eq.s32.totalorder %s23, 2
      %p135 = por %p133, %p134
      %p136 = scmp.ne.s32.totalorder %s125, %s126
      %p137 = scmp.eq.s32.totalorder %s23, 0
      %p138 = por %p136, %p137
      %p139 = scmp.ne.s32.totalorder %s125, %s126
      %p140 = scmp.eq.s32.totalorder %s24, 2
      %p141 = por %p139, %p140
      %p143 = scmp.ne.s32.totalorder %s126, %s142
      %p144 = scmp.eq.s32.totalorder %s24, 0
      %p145 = por %p143, %p144
      %p146 = scmp.le.s32.totalorder 1, %s18
      %p147 = scmp.lt.s32.totalorder %s18, 4
      %p148 = pnand %p146, %p147
      %p149 = pneg %p148
      // Predicated region
      $region9: #{tpu_custom_call.1} parent=5 // pred_check
        _
      $region10: #{tpu_custom_call.1} parent=5 // pred_check_branch
        %151 = sbr.rel (%p148) target = $region12
      $region11: #{tpu_custom_call.1} parent=5 // pred_region
        %s152 = ssub.s32 %s18, 1
      $region12: #{tpu_custom_call.1} parent=5 // pred_fallthru
        _
      %p153 = scmp.lt.s32.totalorder %s18, 3
      // Predicated region
      $region13: #{tpu_custom_call.1} parent=5 // pred_check
        %p154 = pneg %p153
      $region14: #{tpu_custom_call.1} parent=5 // pred_check_branch
        %156 = sbr.rel (%p154) target = $region16
      $region15: #{tpu_custom_call.1} parent=5 // pred_region
        // Predicated region
        $region17: #{tpu_custom_call.1} parent=15 // pred_check
          %p157 = pneg %p52
        $region18: #{tpu_custom_call.1} parent=15 // pred_check_branch
          %159 = sbr.rel (%p157) target = $region20
        $region19: #{tpu_custom_call.1} parent=15 // pred_region
          %s160 = sand.u32 %s42, 1
          %s161 = scalar_lea.sflag [#allocation3], %s160
          %s162 = sand.u32 %s42, 1
          %s163 = smul.addr %s162, 8
          %s164 = scalar_lea.vmem [#allocation2], %s163
          %s165 = smul.u32 2, %s26
          %s167 = ssub.s32 128, 128
          %168 = vsyncadd %s161, %s167
          %s169 = smul.addr %s25, 2
          %s170 = sadd.s32 %s165, %s169
          %s171 = smul.addr %s170, 64
          %s172 = scalar_lea.hbm %s0, %s171
          %s173 = sshll.u32 %s164, 4
          %s174 = int_to_ptr.vmem [resolvable:$true] %s173
          %179 = dma.hbm_to_vmem [thread:$0]  %s172, 128, %s174, %s161, 64, 64, 4
        $region20: #{tpu_custom_call.1} parent=15 // pred_fallthru
          _
        // Predicated region
        $region21: #{tpu_custom_call.1} parent=15 // pred_check
          %p180 = pneg %p78
        $region22: #{tpu_custom_call.1} parent=15 // pred_check_branch
          %182 = sbr.rel (%p180) target = $region24
        $region23: #{tpu_custom_call.1} parent=15 // pred_region
          %s183 = sand.u32 %s68, 1
          %s184 = scalar_lea.sflag [#allocation6], %s183
          %s185 = sand.u32 %s68, 1
          %s186 = smul.addr %s185, 16
          %s187 = scalar_lea.vmem [#allocation5], %s186
          %s189 = ssub.s32 256, 256
          %190 = vsyncadd %s184, %s189
          %s191 = smul.addr %s25, 4
          %s192 = smul.addr %s191, 64
          %s193 = scalar_lea.hbm %s1, %s192
          %s194 = sshll.u32 %s187, 4
          %s195 = int_to_ptr.vmem [resolvable:$true] %s194
          %200 = dma.hbm_to_vmem [thread:$0]  %s193, 256, %s195, %s184, 64, 64, 4
        $region24: #{tpu_custom_call.1} parent=15 // pred_fallthru
          _
        // Predicated region
        $region25: #{tpu_custom_call.1} parent=15 // pred_check
          %p201 = pneg %p104
        $region26: #{tpu_custom_call.1} parent=15 // pred_check_branch
          %203 = sbr.rel (%p201) target = $region28
        $region27: #{tpu_custom_call.1} parent=15 // pred_region
          %p204 = scmp.lt.s32.totalorder %s25, 2
          %s205 = scalar_select %p204, %s25, 2
          %s206 = scalar_lea.vmem %s2, %s205
        $region28: #{tpu_custom_call.1} parent=15 // pred_fallthru
          _
      $region16: #{tpu_custom_call.1} parent=5 // pred_fallthru
        _
      %p207 = scmp.le.s32.totalorder 1, %s18
      %p208 = scmp.lt.s32.totalorder %s18, 4
      %p209 = pnand %p207, %p208
      %p210 = pneg %p209
      // Predicated region
      $region29: #{tpu_custom_call.1} parent=5 // pred_check
        _
      $region30: #{tpu_custom_call.1} parent=5 // pred_check_branch
        %212 = sbr.rel (%p209) target = $region32
      $region31: #{tpu_custom_call.1} parent=5 // pred_region
        %s213 = ssub.s32 %s18, 1
        %s214 = sand.u32 %s45, 1
        %s215 = scalar_lea.sflag [#allocation3], %s214
        %s216 = sand.u32 %s45, 1
        %s217 = smul.addr %s216, 8
        %s218 = scalar_lea.vmem [#allocation2], %s217
        // Predicated region
        $region33: #{tpu_custom_call.1} parent=31 // pred_check
          %p219 = pneg %p58
        $region34: #{tpu_custom_call.1} parent=31 // pred_check_branch
          %221 = sbr.rel (%p219) target = $region36
        $region35: #{tpu_custom_call.1} parent=31 // pred_region
          %222 = dma.done %s215, 128
        $region36: #{tpu_custom_call.1} parent=31 // pred_fallthru
          _
        %s223 = sand.u32 %s71, 1
        %s224 = scalar_lea.sflag [#allocation6], %s223
        %s225 = sand.u32 %s71, 1
        %s226 = smul.addr %s225, 16
        %s227 = scalar_lea.vmem [#allocation5], %s226
        // Predicated region
        $region37: #{tpu_custom_call.1} parent=31 // pred_check
          %p228 = pneg %p84
        $region38: #{tpu_custom_call.1} parent=31 // pred_check_branch
          %230 = sbr.rel (%p228) target = $region40
        $region39: #{tpu_custom_call.1} parent=31 // pred_region
          %231 = dma.done %s224, 256
        $region40: #{tpu_custom_call.1} parent=31 // pred_fallthru
          _
        %s232 = sand.u32 %s45, 1
        %s233 = scalar_lea.sflag [#allocation3], %s232
        %s234 = sand.u32 %s45, 1
        %s235 = smul.addr %s234, 8
        %s236 = scalar_lea.vmem [#allocation2], %s235
        %p237 = pneg %p58
        %p238 = pneg %p55
        %s239 = sand.u32 %s71, 1
        %s240 = scalar_lea.sflag [#allocation6], %s239
        %s241 = sand.u32 %s71, 1
        %s242 = smul.addr %s241, 16
        %s243 = scalar_lea.vmem [#allocation5], %s242
        %p244 = pneg %p84
        %p245 = pneg %p81
        %p246 = scmp.lt.s32.totalorder %s27, 2
        %s247 = scalar_select %p246, %s27, 2
        %s248 = scalar_lea.vmem %s2, %s247
        %p249 = pneg %p110
        %p250 = pneg %p107
        %p251 = pneg %p138
        %p252 = pneg %p135
        %s253 = sand.u32 %s125, 1
        %s254 = scalar_lea.sflag [#allocation4], %s253
        %s255 = sand.u32 %s125, 1
        %s256 = smul.addr %s255, 8
        %s257 = scalar_lea.vmem [#allocation7], %s256
        %s258 = smul.u32 2, %s28
        %p259 = scmp.lt.s32.totalorder %s27, 2
        %s260 = scalar_select %p259, %s27, 2
        %s261 = scalar_lea.vmem %s2, %s260
        %s262 = smul.u32 2, %s28
        %v264 = vld [vmem:[%s218] sm:$0xf]
        %v265 = vld [vmem:[%s218 + $0x4] sm:$0xf]
        %v266 = vld [vmem:[%s227] sm:$0xf]
        %v267 = vld [vmem:[%s227 + $0x4] sm:$0xf]
        %v268 = vld [vmem:[%s227 + $0x8] sm:$0xf]
        %v269 = vld [vmem:[%s227 + $0xc] sm:$0xf]
        %v270 = vld [vmem:[%s261] sm:$0x1]
        %v271 = vunpack.c.l.bf16 %v270
        %v272 = vlaneseq
        %v273 = vshrl.u32 %v272, 7
        %v274 = vsub.s32 0, %v273
        %v275 = vrot.slane %v271, %v274
        %v278 = vunpack.c.l.b16 %v264
        %v279 = vunpack.c.l.b16 %v265
        %v280 = vpack.c.b16 %v279, %v278
        %v285 = vunpack.c.l.b16 %v266
        %v286 = vunpack.c.l.b16 %v267
        %v287 = vunpack.c.l.b16 %v268
        %v288 = vunpack.c.l.b16 %v269
        %v289 = vpack.c.b16 %v286, %v285
        %v290 = vpack.c.b16 %v288, %v287
        %vm293 = vcmask 261120
        %v295 = vsel %vm293, %v280, 0
        %297 = vmatprep.subr.bf16.mxu0 0
        %298 = vmatpush1.bf16.msra.mxu0 %v289
        %299 = vmatprep.subr.bf16.mxu0 0
        %300 = vmatpush1.bf16.msra.mxu0 %v290
        %301 = vmatprep.subr.bf16.mxu0 0
        %302 = vmatpush1.bf16.msra.mxu0 0
        %303 = vmatprep.subr.bf16.mxu0 0
        %304 = vmatpush1.bf16.msra.mxu0 0
        %305 = vmatprep.subr.bf16.mxu0 0
        %306 = vmatpush1.bf16.msra.mxu0 0
        %307 = vmatprep.subr.bf16.mxu0 0
        %308 = vmatpush1.bf16.msra.mxu0 0
        %309 = vmatprep.subr.bf16.mxu0 0
        %310 = vmatpush1.bf16.msra.mxu0 0
        %311 = vmatprep.subr.bf16.mxu0 0
        %312 = vmatpush1.bf16.msra.mxu0 0
        %313 = vmatprep.subr.bf16.mxu0 0
        %314 = vmatpush1.bf16.msra.mxu0 0
        %315 = vmatprep.subr.bf16.mxu0 0
        %316 = vmatpush1.bf16.msra.mxu0 0
        %317 = vmatprep.subr.bf16.mxu0 0
        %318 = vmatpush1.bf16.msra.mxu0 0
        %319 = vmatprep.subr.bf16.mxu0 0
        %320 = vmatpush1.bf16.msra.mxu0 0
        %321 = vmatprep.subr.bf16.mxu0 0
        %322 = vmatpush1.bf16.msra.mxu0 0
        %323 = vmatprep.subr.bf16.mxu0 0
        %324 = vmatpush1.bf16.msra.mxu0 0
        %325 = vmatprep.subr.bf16.mxu0 0
        %326 = vmatpush1.bf16.msra.mxu0 0
        %327 = vmatprep.subr.bf16.mxu0 0
        %328 = vmatpush1.bf16.msra.mxu0 0
        %329 = vmatprep.mubr.bf16.mxu0 0
        %330 = vmatmul.mubr.bf16.gmra.mrb[0].mxu0 %v295
        %v331 = vpop.f32.mrb[0].mxu0
        %v332 = vadd.f32 %v275, %v331
        %v333 = vpop.f32.mrb[0].mxu0
        %v334 = vpop.f32.mrb[0].mxu0
        %v335 = vadd.f32 %v275, %v334
        %v336 = vpop.f32.mrb[0].mxu0
        %337 = vdwg.mxu0
        %v338 = vpack.c.bf16 %v335, %v332
        %v340 = vunpack.c.l.b16 %v338
        %v341 = vunpack.c.h.b16 %v338
        %v342 = vpack.c.b16 %v340, %v340
        %v343 = vpack.c.b16 %v341, %v341
        %vm346 = vcmask 257024
        %347 = vst.msk [vmem:[%s257] sm:$0xf] %vm346, %v342
        %348 = vst.msk [vmem:[%s257 + $0x4] sm:$0xf] %vm346, %v343
        %s349 = sand.u32 %s125, 1
        %s350 = scalar_lea.sflag [#allocation4], %s349
        %s351 = sand.u32 %s125, 1
        %s352 = smul.addr %s351, 8
        %s353 = scalar_lea.vmem [#allocation7], %s352
        // Predicated region
        $region41: #{tpu_custom_call.1} parent=31 // pred_check
          %p354 = pneg %p135
        $region42: #{tpu_custom_call.1} parent=31 // pred_check_branch
          %356 = sbr.rel (%p354) target = $region44
        $region43: #{tpu_custom_call.1} parent=31 // pred_region
          %s357 = smul.u32 2, %s28
          %s359 = ssub.s32 128, 128
          %360 = vsyncadd %s350, %s359
          %s361 = smul.addr %s27, 2
          %s362 = sadd.s32 %s357, %s361
          %s363 = smul.addr %s362, 64
          %s364 = scalar_lea.hbm %s3, %s363
          %s365 = sshll.u32 %s353, 4
          %s366 = int_to_ptr.vmem [resolvable:$true] %s365
          %371 = dma.vmem_to_hbm [thread:$0]  %s366, 128, %s364, %s350, 64, 64, 4
        $region44: #{tpu_custom_call.1} parent=31 // pred_fallthru
          _
      $region32: #{tpu_custom_call.1} parent=5 // pred_fallthru
        _
      %p372 = scmp.le.s32.totalorder 2, %s18
      // Predicated region
      $region45: #{tpu_custom_call.1} parent=5 // pred_check
        %p373 = pneg %p372
      $region46: #{tpu_custom_call.1} parent=5 // pred_check_branch
        %375 = sbr.rel (%p373) target = $region48
      $region47: #{tpu_custom_call.1} parent=5 // pred_region
        %s376 = ssub.s32 %s18, 2
        // Predicated region
        $region49: #{tpu_custom_call.1} parent=47 // pred_check
          %p377 = pneg %p141
        $region50: #{tpu_custom_call.1} parent=47 // pred_check_branch
          %379 = sbr.rel (%p377) target = $region52
        $region51: #{tpu_custom_call.1} parent=47 // pred_region
          %s380 = sand.u32 %s126, 1
          %s381 = scalar_lea.sflag [#allocation4], %s380
          %s382 = sand.u32 %s126, 1
          %s383 = smul.addr %s382, 8
          %s384 = scalar_lea.vmem [#allocation7], %s383
          %385 = dma.done %s381, 128
        $region52: #{tpu_custom_call.1} parent=47 // pred_fallthru
          _
      $region48: #{tpu_custom_call.1} parent=5 // pred_fallthru
        _
    $region6: #{tpu_custom_call.1} parent=1 // loop_footer
      %s22 = sadd.s32 1, %s18
    $region7: #{tpu_custom_call.1} parent=1 // loop_footer_branch
      %17 = sbr.rel target = $region3
    $region8: #{tpu_custom_call.1} parent=1 // loop_exit
      _
    %386 = vsyncpa [#allocation3], 1
    %s387 = scalar_lea.sflag [#allocation3], 1
    %388 = vsyncpa %s387, 1
    %389 = vsyncpa [#allocation6], 1
    %s390 = scalar_lea.sflag [#allocation6], 1
    %391 = vsyncpa %s390, 1
    %392 = vsyncpa [#allocation4], 1
    %s393 = scalar_lea.sflag [#allocation4], 1
    %394 = vsyncpa %s393, 1

</llo_original>
